<compile_context>
chip_gen: v6e
topology: v6e:2x2x1
jax: 0.10.0
libtpu: 0.0.40
codegen_flags: <defaults>
</compile_context>

<pallas_src>
import functools

import jax
import jax.numpy as jnp
from jax.experimental import pallas as pl
from jax.experimental.pallas import tpu as pltpu

_SUBLANE = 8
_LANE = 128
_MAX_TILE_HW = 8192                 # lane-axis grid tile (multiple of 128)
_RESIDENT_PTAB_LIMIT = 2 << 20      # keep param table VMEM-resident below this


def _round_up(x, m):
    return ((x + m - 1) // m) * m


@functools.lru_cache(maxsize=None)
def _vmem_capacity_bytes():
    try:
        return int(pltpu.get_tpu_info().vmem_capacity_bytes)
    except Exception:
        return 64 * 1024 * 1024     # conservative fallback (v7x per-TC figure)


def _target_block_bytes():
    # v5e / v6e: 128 MiB VMEM -> ~8 MiB activation blocks (per-grid-step
    # overhead ~3% of DMA time).  v7x: 64 MiB per TensorCore -> cap at 4 MiB
    # so in+out double-buffering stays comfortably inside the budget.
    return (8 << 20) if _vmem_capacity_bytes() >= (100 << 20) else (4 << 20)


def _loop(n, body):
    """Run body(i) for i in range(n).  Tiny trip counts unroll statically;
    longer loops lower to fori_loop so live ranges stay bounded (vregs)."""
    if n <= 2:
        for i in range(n):
            body(i)
    else:
        def wrapped(i, carry):
            body(i)
            return carry
        jax.lax.fori_loop(0, n, wrapped, None)


def _make_bit_estimator_kernel(tile_rows, tile_hw, cr, cl, params_resident):
    """Build the kernel for one (tile_rows, tile_hw) activation block.

    p_ref: (rows_padded, 11) f32 if params_resident else (tile_rows, 11) f32
           columns: [sp_h1, b1, ta1, sp_h2, b2, ta2, sp_h3, b3, ta3, sp_h4, b4]
    x_ref/o_ref: (tile_rows, tile_hw) activation tiles.
    """
    n_row_chunks = pl.cdiv(tile_rows, cr)
    n_lane_chunks = pl.cdiv(tile_hw, cl)

    def kernel(p_ref, x_ref, o_ref):
        if params_resident:
            prow0 = pl.program_id(0) * tile_rows
            if tile_rows % _SUBLANE == 0:
                prow0 = pl.multiple_of(prow0, _SUBLANE)
        else:
            prow0 = 0

        def row_chunk(ri):
            r = ri * cr
            if cr % _SUBLANE == 0:
                r = pl.multiple_of(r, _SUBLANE)

            # Per-row params for this row chunk; hoisted out of the lane loop.
            pc = p_ref[pl.ds(prow0 + r, cr), :]      # (cr, 11) f32
            sp1, b1, ta1 = pc[:, 0:1], pc[:, 1:2], pc[:, 2:3]
            sp2, b2, ta2 = pc[:, 3:4], pc[:, 4:5], pc[:, 5:6]
            sp3, b3, ta3 = pc[:, 6:7], pc[:, 7:8], pc[:, 8:9]
            sp4, b4 = pc[:, 9:10], pc[:, 10:11]

            def lane_chunk(ci):
                c = ci * cl
                if cl % _LANE == 0:
                    c = pl.multiple_of(c, _LANE)
                x = x_ref[pl.ds(r, cr), pl.ds(c, cl)].astype(jnp.float32)
                # Three non-final Bitparm stages.
                x = x * sp1 + b1
                x = x + jnp.tanh(x) * ta1
                x = x * sp2 + b2
                x = x + jnp.tanh(x) * ta2
                x = x * sp3 + b3
                x = x + jnp.tanh(x) * ta3
                # Final stage.
                x = jax.nn.sigmoid(x * sp4 + b4)
                o_ref[pl.ds(r, cr), pl.ds(c, cl)] = x.astype(o_ref.dtype)

            _loop(n_lane_chunks, lane_chunk)

        _loop(n_row_chunks, row_chunk)

    return kernel


def init_bit_estimator_params(channel, key):
    """Deterministic init matching torch.nn.init.normal_(std=0.01).

    Returns an (11, channel) f32 array of raw parameters:
      rows 0..8 : (h, b, a) for f1, f2, f3
      rows 9..10: (h, b)    for the final f4
    """
    return 0.01 * jax.random.normal(key, (11, channel), dtype=jnp.float32)


def _pack_param_table(params, n_batch, rows_padded):
    """Raw (11, C) params -> per-row (rows_padded, 11) table, transcendentals folded."""
    params = params.astype(jnp.float32)
    sp = jax.nn.softplus
    cols = []
    for i in range(3):
        cols += [sp(params[3 * i]), params[3 * i + 1], jnp.tanh(params[3 * i + 2])]
    cols += [sp(params[9]), params[10]]
    table_c = jnp.stack(cols, axis=-1)           # (C, 11)
    table = jnp.tile(table_c, (n_batch, 1))      # (N*C, 11)
    rows = table.shape[0]
    if rows_padded > rows:                       # pad so in-kernel row slices never go OOB
        table = jnp.pad(table, ((0, rows_padded - rows), (0, 0)))
    return table


def _choose_tiles(rows, hw, itemsize, target_block_bytes):
    """Pick (tile_rows, tile_hw, n_row_blocks, n_lane_blocks)."""
    # Lane tile: full HW if small enough, else a big multiple of 128.
    tile_hw = hw if hw <= _MAX_TILE_HW else _MAX_TILE_HW
    n_lane_blocks = pl.cdiv(hw, tile_hw)

    # Row tile targeting ~target_block_bytes per activation block.
    rows_per_block = max(1, target_block_bytes // max(1, tile_hw * itemsize))
    rows_per_block = min(rows_per_block, rows)
    if rows_per_block < rows:
        rows_per_block = max(_SUBLANE, (rows_per_block // _SUBLANE) * _SUBLANE)
    n_row_blocks = pl.cdiv(rows, rows_per_block)

    # Megacore (2 TensorCores on v7x): if there is only one block, split the
    # problem so both cores get work — provided it is big enough to be worth it.
    if n_row_blocks * n_lane_blocks == 1:
        if rows >= 2 * _SUBLANE:
            n_row_blocks = 2
        elif hw >= 2048:
            tile_hw = _round_up(pl.cdiv(hw, 2), _LANE)
            n_lane_blocks = pl.cdiv(hw, tile_hw)

    # Balanced row shards, multiple of 8 sublanes.
    if n_row_blocks > 1:
        tile_rows = _round_up(pl.cdiv(rows, n_row_blocks), _SUBLANE)
        n_row_blocks = pl.cdiv(rows, tile_rows)
    else:
        tile_rows = rows
    return tile_rows, tile_hw, n_row_blocks, n_lane_blocks


def _choose_chunks(tile_rows, tile_hw):
    """In-kernel sub-chunk (cr, cl): keeps the fused chain's intermediates in vregs."""
    cr = _SUBLANE if tile_rows % _SUBLANE == 0 else tile_rows
    cl = tile_hw
    if tile_hw % _LANE == 0:
        for cand in (1024, 512, 256, 128):
            if tile_hw % cand == 0:
                cl = cand
                break
    return cr, cl


@jax.jit
def bit_estimator_forward(x_nchw, params):
    """Forward pass of BitEstimator.

    x_nchw: (N, C, H, W) array (PyTorch NCHW convention).
    params: (11, C) f32 raw parameter stack (h/b/a per stage).
    Returns (N, C, H, W) array of the same dtype as x_nchw.
    """
    N, C, H, W = x_nchw.shape
    dtype = x_nchw.dtype
    itemsize = jnp.dtype(dtype).itemsize
    HW = H * W
    rows = N * C

    # Zero-copy reshape: channel-rows on the sublane axis, spatial on lanes.
    x2d = x_nchw.reshape(rows, HW)

    tile_rows, tile_hw, n_row_blocks, n_lane_blocks = _choose_tiles(
        rows, HW, itemsize, _target_block_bytes())
    cr, cl = _choose_chunks(tile_rows, tile_hw)
    rows_padded = n_row_blocks * tile_rows

    # Param table: VMEM-resident (fetched once) unless N*C is very large.
    ptab_vmem_rows_resident = rows_padded * _LANE * 4     # 11 lanes pad to 128
    params_resident = ptab_vmem_rows_resident <= _RESIDENT_PTAB_LIMIT
    ptab = _pack_param_table(params, N, rows_padded)       # (rows_padded, 11) f32

    if params_resident:
        p_spec = pl.BlockSpec((rows_padded, 11), lambda i, j: (0, 0))
        ptab_vmem = ptab_vmem_rows_resident
    else:
        p_spec = pl.BlockSpec((tile_rows, 11), lambda i, j: (i, 0))
        ptab_vmem = tile_rows * _LANE * 4

    # Explicit VMEM budget: double-buffered in + out blocks, param table,
    # plus one block of headroom for the compiler's internal scratch.
    blk_bytes = tile_rows * tile_hw * itemsize
    vmem_limit = 4 * blk_bytes + 2 * ptab_vmem + blk_bytes + (1 << 20)
    vmem_limit = max(vmem_limit, 32 << 20)

    elems = rows * HW
    cost = pl.CostEstimate(
        flops=14 * elems,
        transcendentals=4 * elems,
        bytes_accessed=2 * elems * itemsize + rows_padded * 11 * 4,
    )

    kernel = _make_bit_estimator_kernel(tile_rows, tile_hw, cr, cl, params_resident)

    out2d = pl.pallas_call(
        kernel,
        out_shape=jax.ShapeDtypeStruct((rows, HW), dtype),
        grid_spec=pltpu.PrefetchScalarGridSpec(
            num_scalar_prefetch=0,
            grid=(n_row_blocks, n_lane_blocks),
            in_specs=[
                p_spec,
                # Lane-dense activation tile.
                pl.BlockSpec((tile_rows, tile_hw), lambda i, j: (i, j)),
            ],
            out_specs=pl.BlockSpec((tile_rows, tile_hw), lambda i, j: (i, j)),
        ),
        compiler_params=pltpu.CompilerParams(
            dimension_semantics=("parallel", "parallel"),
            vmem_limit_bytes=int(vmem_limit),
        ),
        cost_estimate=cost,
    )(ptab, x2d)

    return out2d.reshape(N, C, H, W)


def _reference_forward(x_nchw, params):
    """Pure-JAX reference (mirrors the PyTorch module) for validation."""
    x = x_nchw.astype(jnp.float32)
    C = x.shape[1]
    params = params.astype(jnp.float32)

    def bcast(row):
        return params[row].reshape(1, C, 1, 1)

    for i in range(3):
        h, b, a = bcast(3 * i), bcast(3 * i + 1), bcast(3 * i + 2)
        x = x * jax.nn.softplus(h) + b
        x = x + jnp.tanh(x) * jnp.tanh(a)
    x = x * jax.nn.softplus(bcast(9)) + bcast(10)
    return jax.nn.sigmoid(x).astype(x_nchw.dtype)


if __name__ == "__main__":
    key = jax.random.PRNGKey(0)
    k_params, k_x = jax.random.split(key)

    N, C, H, W = 2, 4, 16, 16
    params = init_bit_estimator_params(C, k_params)
    x = jax.random.normal(k_x, (N, C, H, W), dtype=jnp.float32)

    out = bit_estimator_forward(x, params)
    out = jax.block_until_ready(out)

    ref = _reference_forward(x, params)
    assert out.shape == (N, C, H, W)
    assert out.dtype == x.dtype
    assert jnp.allclose(out, ref, atol=1e-5, rtol=1e-5)

    print("KERNEL_OK")
</pallas_src>

<mosaic_0001>
module attributes {stable_mosaic.version = 11 : i64} {
  func.func @kernel(%arg0: i32, %arg1: i32, %arg2: memref<8x11xf32, #tpu.memory_space<vmem>>, %arg3: memref<8x256xf32, #tpu.memory_space<vmem>>, %arg4: memref<8x256xf32, #tpu.memory_space<vmem>>) attributes {dimension_semantics = [#tpu.dimension_semantics<parallel>, #tpu.dimension_semantics<parallel>], iteration_bounds = array<i64: 1, 1>, scalar_prefetch = 0 : i64, scratch_operands = 0 : i64, tpu.core_type = #tpu.core_type<tc>, window_params = [{pipeline_mode = #tpu.pipeline_mode<synchronous>, transform_indices = @transform_0, window_bounds = array<i64: 8, 11>}, {transform_indices = @transform_1, window_bounds = array<i64: 8, 256>}, {transform_indices = @transform_2, window_bounds = array<i64: 8, 256>}]} {
    %c8_i32 = arith.constant 8 : i32
    %0 = arith.muli %arg0, %c8_i32 : i32
    %1 = tpu.assume_multiple %0, 8 : i32
    %c0_i32 = arith.constant 0 : i32
    %2 = tpu.assume_multiple %c0_i32, 8 : i32
    %3 = arith.addi %1, %2 : i32
    %4 = arith.index_cast %3 : i32 to index
    %c0 = arith.constant 0 : index
    %5 = vector.load %arg2[%4, %c0] : memref<8x11xf32, #tpu.memory_space<vmem>>, vector<8x11xf32>
    %6 = vector.extract_strided_slice %5 {offsets = [0, 0], sizes = [8, 1], strides = [1, 1]} : vector<8x11xf32> to vector<8x1xf32>
    %7 = vector.extract_strided_slice %5 {offsets = [0, 1], sizes = [8, 1], strides = [1, 1]} : vector<8x11xf32> to vector<8x1xf32>
    %8 = vector.extract_strided_slice %5 {offsets = [0, 2], sizes = [8, 1], strides = [1, 1]} : vector<8x11xf32> to vector<8x1xf32>
    %9 = vector.extract_strided_slice %5 {offsets = [0, 3], sizes = [8, 1], strides = [1, 1]} : vector<8x11xf32> to vector<8x1xf32>
    %10 = vector.extract_strided_slice %5 {offsets = [0, 4], sizes = [8, 1], strides = [1, 1]} : vector<8x11xf32> to vector<8x1xf32>
    %11 = vector.extract_strided_slice %5 {offsets = [0, 5], sizes = [8, 1], strides = [1, 1]} : vector<8x11xf32> to vector<8x1xf32>
    %12 = vector.extract_strided_slice %5 {offsets = [0, 6], sizes = [8, 1], strides = [1, 1]} : vector<8x11xf32> to vector<8x1xf32>
    %13 = vector.extract_strided_slice %5 {offsets = [0, 7], sizes = [8, 1], strides = [1, 1]} : vector<8x11xf32> to vector<8x1xf32>
    %14 = vector.extract_strided_slice %5 {offsets = [0, 8], sizes = [8, 1], strides = [1, 1]} : vector<8x11xf32> to vector<8x1xf32>
    %15 = vector.extract_strided_slice %5 {offsets = [0, 9], sizes = [8, 1], strides = [1, 1]} : vector<8x11xf32> to vector<8x1xf32>
    %16 = vector.extract_strided_slice %5 {offsets = [0, 10], sizes = [8, 1], strides = [1, 1]} : vector<8x11xf32> to vector<8x1xf32>
    %c0_i32_0 = arith.constant 0 : i32
    %17 = tpu.assume_multiple %c0_i32_0, 128 : i32
    %18 = arith.index_cast %2 : i32 to index
    %19 = arith.index_cast %17 : i32 to index
    %20 = vector.load %arg3[%18, %19] : memref<8x256xf32, #tpu.memory_space<vmem>>, vector<8x256xf32>
    %21 = vector.broadcast %6 : vector<8x1xf32> to vector<8x256xf32>
    %22 = arith.mulf %20, %21 : vector<8x256xf32>
    %23 = vector.broadcast %7 : vector<8x1xf32> to vector<8x256xf32>
    %24 = arith.addf %22, %23 : vector<8x256xf32>
    %25 = math.tanh %24 : vector<8x256xf32>
    %26 = vector.broadcast %8 : vector<8x1xf32> to vector<8x256xf32>
    %27 = arith.mulf %25, %26 : vector<8x256xf32>
    %28 = arith.addf %24, %27 : vector<8x256xf32>
    %29 = vector.broadcast %9 : vector<8x1xf32> to vector<8x256xf32>
    %30 = arith.mulf %28, %29 : vector<8x256xf32>
    %31 = vector.broadcast %10 : vector<8x1xf32> to vector<8x256xf32>
    %32 = arith.addf %30, %31 : vector<8x256xf32>
    %33 = math.tanh %32 : vector<8x256xf32>
    %34 = vector.broadcast %11 : vector<8x1xf32> to vector<8x256xf32>
    %35 = arith.mulf %33, %34 : vector<8x256xf32>
    %36 = arith.addf %32, %35 : vector<8x256xf32>
    %37 = vector.broadcast %12 : vector<8x1xf32> to vector<8x256xf32>
    %38 = arith.mulf %36, %37 : vector<8x256xf32>
    %39 = vector.broadcast %13 : vector<8x1xf32> to vector<8x256xf32>
    %40 = arith.addf %38, %39 : vector<8x256xf32>
    %41 = math.tanh %40 : vector<8x256xf32>
    %42 = vector.broadcast %14 : vector<8x1xf32> to vector<8x256xf32>
    %43 = arith.mulf %41, %42 : vector<8x256xf32>
    %44 = arith.addf %40, %43 : vector<8x256xf32>
    %45 = vector.broadcast %15 : vector<8x1xf32> to vector<8x256xf32>
    %46 = arith.mulf %44, %45 : vector<8x256xf32>
    %47 = vector.broadcast %16 : vector<8x1xf32> to vector<8x256xf32>
    %48 = arith.addf %46, %47 : vector<8x256xf32>
    %49 = arith.negf %48 : vector<8x256xf32>
    %50 = math.exp %49 : vector<8x256xf32>
    %cst = arith.constant 1.000000e+00 : f32
    %51 = vector.broadcast %cst : f32 to vector<8x256xf32>
    %52 = arith.addf %51, %50 : vector<8x256xf32>
    %53 = arith.divf %51, %52 : vector<8x256xf32>
    %54 = arith.index_cast %2 : i32 to index
    %55 = arith.index_cast %17 : i32 to index
    %56 = vector.load %arg4[%54, %55] : memref<8x256xf32, #tpu.memory_space<vmem>>, vector<8x256xf32>
    tpu.vector_store %arg4[%54, %55], %53 {strides = array<i32>} : memref<8x256xf32, #tpu.memory_space<vmem>>, vector<8x256xf32>,
    return
  }
  func.func @transform_0(%arg0: i32, %arg1: i32) -> (i32, i32) {
    %c0_i32 = arith.constant 0 : i32
    %c0_i32_0 = arith.constant 0 : i32
    %c0_i32_1 = arith.constant 0 : i32
    return %c0_i32, %c0_i32_0 : i32, i32
  }
  func.func @transform_1(%arg0: i32, %arg1: i32) -> (i32, i32) {
    %c0_i32 = arith.constant 0 : i32
    return %arg0, %arg1 : i32, i32
  }
  func.func @transform_2(%arg0: i32, %arg1: i32) -> (i32, i32) {
    %c0_i32 = arith.constant 0 : i32
    return %arg0, %arg1 : i32, i32
  }
}

</mosaic_0001>

<llo_original>
// kernel: bit_estimator_forward.1
$region0: #{bit_estimator_forward.1}
  #allocation0 [shape = 'u32[]', space=smem, size = 0x4, offset = 0x4, fixed_abs, tag = 'smem constant byte address 0x4 - core index']
  #allocation1 [shape = 'u32[144,128]{1,0:T(1,128)}', space=vmem, size = 0x12000, scoped, tag = 'internal scratch']
  %s0 = inlined_call_operand.vmem [shape: f32[8,11], index: 0, kind: input, shape index: {}]
  %s1 = inlined_call_operand.vmem [shape: f32[8,256], index: 1, kind: input, shape index: {}]
  %s2 = inlined_call_operand.vmem [shape: f32[8,256], index: 2, kind: output, shape index: {}]
  %s3 = sld [smem:[#allocation0]]
  $region18: #{bit_estimator_forward.1} parent=0
    _
  %s5 = ssub.s32 1, %s3
  %s6 = scalar_select 0, %s5, %s3
  // Predicated region
  $region2: #{bit_estimator_forward.1} parent=0 // pred_check
    _
  $region3: #{bit_estimator_forward.1} parent=0 // pred_check_branch
    %8 = sbr.rel (0) target = $region5
  $region4: #{bit_estimator_forward.1} parent=0 // pred_region
    _
  $region5: #{bit_estimator_forward.1} parent=0 // pred_fallthru
    _
  // Predicated region
  $region6: #{bit_estimator_forward.1} parent=0 // pred_check
    _
  $region7: #{bit_estimator_forward.1} parent=0 // pred_check_branch
    %10 = sbr.rel (0) target = $region9
  $region8: #{bit_estimator_forward.1} parent=0 // pred_region
    _
  $region9: #{bit_estimator_forward.1} parent=0 // pred_fallthru
    _
  %s11 = smul.u32 0, 8
  %s12 = sadd.s32 %s11, 0
  %s13 = scalar_lea.vmem %s0, %s12
  %v14 = vld [vmem:[%s13] sm:$0xff]
  %s15 = smul.u32 0, 2
  %s16 = sadd.s32 0, %s15
  %s17 = smul.addr %s16, 8
  %s18 = scalar_lea.vmem %s1, %s17
  %v19 = vld [vmem:[%s18] sm:$0xff]
  %v20 = vld [vmem:[%s18 + $0x8] sm:$0xff]
  %22 = vset.pattern.permute.xlu0 0
  %23 = vperm.xlu0 %22, %v14
  %v24 = vpop.permute.xlu0 %23
  %v26 = vmul.f32 %v19, %v24
  %v27 = vmul.f32 %v20, %v24
  %28 = vset.pattern.permute.xlu0 1
  %29 = vperm.xlu0 %28, %v14
  %v30 = vpop.permute.xlu0 %29
  %v32 = vadd.f32 %v26, %v30
  %v33 = vadd.f32 %v27, %v30
  %v34 = vtanh.pop %v32
  %v35 = vtanh.pop %v33
  %36 = vset.pattern.permute.xlu0 2
  %37 = vperm.xlu0 %36, %v14
  %v38 = vpop.permute.xlu0 %37
  %v40 = vmul.f32 %v34, %v38
  %v41 = vmul.f32 %v35, %v38
  %v42 = vadd.f32 %v32, %v40
  %v43 = vadd.f32 %v33, %v41
  %44 = vset.pattern.permute.xlu0 3
  %45 = vperm.xlu0 %44, %v14
  %v46 = vpop.permute.xlu0 %45
  %v48 = vmul.f32 %v42, %v46
  %v49 = vmul.f32 %v43, %v46
  %50 = vset.pattern.permute.xlu0 4
  %51 = vperm.xlu0 %50, %v14
  %v52 = vpop.permute.xlu0 %51
  %v54 = vadd.f32 %v48, %v52
  %v55 = vadd.f32 %v49, %v52
  %v56 = vtanh.pop %v54
  %v57 = vtanh.pop %v55
  %58 = vset.pattern.permute.xlu0 5
  %59 = vperm.xlu0 %58, %v14
  %v60 = vpop.permute.xlu0 %59
  %v62 = vmul.f32 %v56, %v60
  %v63 = vmul.f32 %v57, %v60
  %v64 = vadd.f32 %v54, %v62
  %v65 = vadd.f32 %v55, %v63
  %66 = vset.pattern.permute.xlu0 6
  %67 = vperm.xlu0 %66, %v14
  %v68 = vpop.permute.xlu0 %67
  %v70 = vmul.f32 %v64, %v68
  %v71 = vmul.f32 %v65, %v68
  %72 = vset.pattern.permute.xlu0 7
  %73 = vperm.xlu0 %72, %v14
  %v74 = vpop.permute.xlu0 %73
  %v76 = vadd.f32 %v70, %v74
  %v77 = vadd.f32 %v71, %v74
  %v78 = vtanh.pop %v76
  %v79 = vtanh.pop %v77
  %80 = vset.pattern.permute.xlu0 8
  %81 = vperm.xlu0 %80, %v14
  %v82 = vpop.permute.xlu0 %81
  %v84 = vmul.f32 %v78, %v82
  %v85 = vmul.f32 %v79, %v82
  %v86 = vadd.f32 %v76, %v84
  %v87 = vadd.f32 %v77, %v85
  %88 = vset.pattern.permute.xlu0 9
  %89 = vperm.xlu0 %88, %v14
  %v90 = vpop.permute.xlu0 %89
  %v92 = vmul.f32 %v86, %v90
  %v93 = vmul.f32 %v87, %v90
  %94 = vset.pattern.permute.xlu0 10
  %95 = vperm.xlu0 %94, %v14
  %v96 = vpop.permute.xlu0 %95
  %v98 = vadd.f32 %v92, %v96
  %v99 = vadd.f32 %v93, %v96
  %v100 = vxor.u32 %v98, 2147483648
  %v101 = vxor.u32 %v99, 2147483648
  %v102 = vmul.f32 %v100, 1.442695
  %v103 = vpow.pop %v102
  %v104 = vmul.f32 %v101, 1.442695
  %v105 = vpow.pop %v104
  %v106 = vadd.f32 %v103, 1.0
  %v107 = vadd.f32 %v105, 1.0
  %v108 = vrcp.pop %v106
  %v109 = vmul.f32 1.0, %v108
  %v110 = vrcp.pop %v107
  %v111 = vmul.f32 1.0, %v110
  %s112 = smul.addr %s16, 8
  %s113 = scalar_lea.vmem %s2, %s112
  %114 = vst [vmem:[%s113] sm:$0xff] %v109
  %115 = vst [vmem:[%s113 + $0x8] sm:$0xff] %v111
  // Predicated region
  $region10: #{bit_estimator_forward.1} parent=0 // pred_check
    _
  $region11: #{bit_estimator_forward.1} parent=0 // pred_check_branch
    %117 = sbr.rel (0) target = $region13
  $region12: #{bit_estimator_forward.1} parent=0 // pred_region
    _
  $region13: #{bit_estimator_forward.1} parent=0 // pred_fallthru
    _
  // Predicated region
  $region14: #{bit_estimator_forward.1} parent=0 // pred_check
    _
  $region15: #{bit_estimator_forward.1} parent=0 // pred_check_branch
    %119 = sbr.rel (0) target = $region17
  $region16: #{bit_estimator_forward.1} parent=0 // pred_region
    _
  $region17: #{bit_estimator_forward.1} parent=0 // pred_fallthru
    _

</llo_original>
